<compile_context>
chip_gen: v5e
topology: v5e:2x2
jax: 0.10.0
libtpu: 0.0.40
codegen_flags: <defaults>
</compile_context>

<pallas_src>
import jax
import jax.numpy as jnp
from jax.experimental import pallas as pl
from jax.experimental.pallas import tpu as pltpu

_LANE = 128


def _cdiv(a, b):
    return -(-a // b)


def _big_vmem_chip():
    """True on 128-MiB-VMEM generations (v4/v5e/v6e); False (conservative,
    v7x-safe: 64 MiB per TensorCore) otherwise or if detection fails."""
    try:
        kind = jax.devices()[0].device_kind.lower()
    except Exception:
        return False
    return any(tag in kind for tag in ("v4", "v5", "v6"))


def _pick_batch_block(n, bytes_per_batch, target_bytes):
    """Images packed per grid step: as many as the per-step byte target allows,
    but always >= 2 grid steps when N >= 2 (pipelining + v7x 2-TC sharding) and
    ~4 steps while per-step blocks stay >= 1 MiB."""
    nb = max(1, min(n, target_bytes // max(1, bytes_per_batch)))
    if n >= 2:
        nb = min(nb, _cdiv(n, 2))            # at least 2 grid steps
    while nb > 1 and _cdiv(n, nb) < 4 and _cdiv(nb, 2) * bytes_per_batch >= (1 << 20):
        nb = _cdiv(nb, 2)
    return nb


# ----------------------------------------------------------------------------
# Path A: fused single-pass kernel (x read once), nb batch elements per step.
# ----------------------------------------------------------------------------
def _ca_fused_kernel(x_ref, w1_ref, b1_ref, w2_ref, b2_ref, o_ref):
    x = x_ref[...]                                            # (nb, C, HW), native dtype
    # Global average pool: 1/HW already folded into w1, so a plain sum with
    # f32 accumulation (no full-tile f32 copy is materialized).
    pooled = jnp.sum(x, axis=-1, dtype=jnp.float32)           # (nb, C)

    # fc[0]: Conv2d(C, Cr, 1) + bias, ReLU.  Width-1 RHS -> VPU mul + lane reduce.
    h = jnp.sum(w1_ref[...][None] * pooled[:, None, :], axis=-1) + b1_ref[...]   # (nb, Cr)
    h = jnp.maximum(h, 0.0)

    # fc[2]: Conv2d(Cr, C, 1) + bias, Sigmoid.  keepdims keeps C on sublanes so
    # the per-channel scale broadcasts over the spatial lanes with no relayout.
    s = jnp.sum(w2_ref[...][None] * h[:, None, :], axis=-1, keepdims=True)       # (nb, C, 1)
    s = jax.nn.sigmoid(s + b2_ref[...][None])

    # Apply the scale in the input's native dtype (bf16 VALU on v6e/v7x).
    o_ref[...] = (x * s.astype(x.dtype)).astype(o_ref.dtype)


def _ca_fused(x, w1s, b1, w2, b2, target_block_bytes, vmem_limit_bytes):
    N, C, H, W = x.shape
    Cr = w1s.shape[0]
    HW = H * W
    itemsize = jnp.dtype(x.dtype).itemsize

    x_flat = x.reshape(N, C, HW)                              # metadata-only reshape

    nb = _pick_batch_block(N, C * HW * itemsize, target_block_bytes)
    grid = (_cdiv(N, nb),)                                    # tail batch block is partial

    cost = pl.CostEstimate(
        flops=2 * N * C * HW + 4 * N * C * Cr,
        transcendentals=N * C,
        bytes_accessed=2 * N * C * HW * itemsize + 2 * (C * Cr + C + Cr) * 4)

    out_flat = pl.pallas_call(
        _ca_fused_kernel,
        out_shape=jax.ShapeDtypeStruct((N, C, HW), x.dtype),
        grid_spec=pltpu.PrefetchScalarGridSpec(
            num_scalar_prefetch=0,
            grid=grid,
            in_specs=[
                pl.BlockSpec((nb, C, HW), lambda n: (n, 0, 0)),   # x (full C, HW extents)
                pl.BlockSpec((Cr, C), lambda n: (0, 0)),          # W1 / HW
                pl.BlockSpec((1, Cr), lambda n: (0, 0)),          # b1
                pl.BlockSpec((C, Cr), lambda n: (0, 0)),          # W2
                pl.BlockSpec((C, 1), lambda n: (0, 0)),           # b2
            ],
            out_specs=pl.BlockSpec((nb, C, HW), lambda n: (n, 0, 0)),
        ),
        compiler_params=pltpu.CompilerParams(
            dimension_semantics=("parallel",),
            vmem_limit_bytes=vmem_limit_bytes),
        cost_estimate=cost,
    )(x_flat, w1s, b1.reshape(1, Cr), w2, b2.reshape(C, 1))

    return out_flat.reshape(N, C, H, W)


# ----------------------------------------------------------------------------
# Path B: spatially tiled two-pass path for large H*W.
# ----------------------------------------------------------------------------
def _ca_scale_kernel(s_ref, x_ref, o_ref):
    x = x_ref[...]                                            # (1, C, thw), native dtype
    o_ref[...] = x * s_ref[...].astype(x.dtype)               # scale broadcast over lanes


def _ca_tiled(x, w1s, b1, w2, b2, target_block_bytes, vmem_limit_bytes):
    N, C, H, W = x.shape
    Cr = w1s.shape[0]
    HW = H * W
    itemsize = jnp.dtype(x.dtype).itemsize

    # Spatial tile: multiple of 128 lanes, ~target_block_bytes of x per step.
    thw = max(_LANE, (target_block_bytes // (C * itemsize)) // _LANE * _LANE)
    if thw >= HW:
        thw = HW                                              # single full-extent tile
    nT = _cdiv(HW, thw)
    ragged = (HW % thw) != 0                                  # last tile is partial

    x_flat = x.reshape(N, C, HW)

    # NOTE: with N == 1 only one TensorCore is used here (the HW axis is a
    # reduction); splitting it into two partial sums + combine is a possible
    # further v7x optimization.
    def _ca_pool_kernel(x_ref, w1_ref, b1_ref, w2_ref, b2_ref, s_ref, acc_ref):
        t = pl.program_id(1)

        @pl.when(t == 0)
        def _():
            acc_ref[...] = jnp.zeros_like(acc_ref)

        xt = x_ref[0]                                         # (C, thw), native dtype
        if ragged:
            # Mask the unspecified out-of-bounds lanes of the (partial) tile.
            lane = jax.lax.broadcasted_iota(jnp.int32, (C, thw), 1)
            xt = jnp.where(t * thw + lane < HW, xt, 0)
        acc_ref[...] += jnp.sum(xt, axis=-1, keepdims=True, dtype=jnp.float32)   # (C, 1)

        @pl.when(t == nT - 1)
        def _():
            pooled = acc_ref[...]                                                        # (C, 1)
            # Tiny MLP epilogue, once per image: VPU mul + lane reduce (no MXU).
            h = jnp.sum(w1_ref[...] * pooled.T, axis=-1, keepdims=True) + b1_ref[...]    # (Cr, 1)
            h = jnp.maximum(h, 0.0)
            s = jnp.sum(w2_ref[...] * h.T, axis=-1, keepdims=True) + b2_ref[...]         # (C, 1)
            s_ref[...] = jax.nn.sigmoid(s)[None]                                         # (1, C, 1)

    # Pass 1: pooled sum (tiled over HW) -> 1x1-conv MLP -> sigmoid scale (N, C, 1).
    scale = pl.pallas_call(
        _ca_pool_kernel,
        out_shape=jax.ShapeDtypeStruct((N, C, 1), jnp.float32),
        grid_spec=pltpu.PrefetchScalarGridSpec(
            num_scalar_prefetch=0,
            grid=(N, nT),
            in_specs=[
                pl.BlockSpec((1, C, thw), lambda n, t: (n, 0, t)),   # x tile
                pl.BlockSpec((Cr, C), lambda n, t: (0, 0)),          # W1 / HW
                pl.BlockSpec((Cr, 1), lambda n, t: (0, 0)),          # b1
                pl.BlockSpec((C, Cr), lambda n, t: (0, 0)),          # W2
                pl.BlockSpec((C, 1), lambda n, t: (0, 0)),           # b2
            ],
            out_specs=pl.BlockSpec((1, C, 1), lambda n, t: (n, 0, 0)),
            scratch_shapes=[pltpu.VMEM((C, 1), jnp.float32)],
        ),
        compiler_params=pltpu.CompilerParams(
            dimension_semantics=("parallel", "arbitrary"),
            vmem_limit_bytes=vmem_limit_bytes),
        cost_estimate=pl.CostEstimate(
            flops=N * C * HW + 4 * N * C * Cr,
            transcendentals=N * C,
            bytes_accessed=N * C * HW * itemsize + N * C * 4),
    )(x_flat, w1s, b1.reshape(Cr, 1), w2, b2.reshape(C, 1))

    # Pass 2: broadcast-multiply the per-channel scale over spatial tiles.
    # Out-of-bounds lanes of the last partial tile are discarded on store.
    out_flat = pl.pallas_call(
        _ca_scale_kernel,
        out_shape=jax.ShapeDtypeStruct((N, C, HW), x.dtype),
        grid_spec=pltpu.PrefetchScalarGridSpec(
            num_scalar_prefetch=0,
            grid=(N, nT),
            in_specs=[
                pl.BlockSpec((1, C, 1), lambda n, t: (n, 0, 0)),     # scale
                pl.BlockSpec((1, C, thw), lambda n, t: (n, 0, t)),   # x tile
            ],
            out_specs=pl.BlockSpec((1, C, thw), lambda n, t: (n, 0, t)),
        ),
        compiler_params=pltpu.CompilerParams(
            dimension_semantics=("parallel", "parallel"),
            vmem_limit_bytes=vmem_limit_bytes),
        cost_estimate=pl.CostEstimate(
            flops=N * C * HW,
            transcendentals=0,
            bytes_accessed=2 * N * C * HW * itemsize + N * C * 4),
    )(scale, x_flat)

    return out_flat.reshape(N, C, H, W)


# ----------------------------------------------------------------------------
# Public wrapper.
# ----------------------------------------------------------------------------
def ca_layer(x, w1, b1, w2, b2, *,
             fused_block_limit_bytes=None,   # per-image slab cap for the fused path
             target_block_bytes=None):       # target x-block size per grid step
    """x: (N, C, H, W); w1: (Cr, C); b1: (Cr, 1); w2: (C, Cr); b2: (C, 1)."""
    N, C, H, W = x.shape
    HW = H * W

    # Fold the average pool's 1/HW into the first 1x1-conv weight (once).
    w1s = w1.astype(jnp.float32) / float(HW)

    # Generation-aware VMEM budgets.
    big_vmem = _big_vmem_chip()               # v4/v5e/v6e: 128 MiB; else assume v7x (64 MiB/TC)
    if fused_block_limit_bytes is None:
        fused_block_limit_bytes = (24 << 20) if big_vmem else (12 << 20)
    fused_vmem_limit = (100 << 20) if big_vmem else (56 << 20)
    if target_block_bytes is None:
        fused_target = (16 << 20) if big_vmem else (8 << 20)
        tiled_target = 8 << 20
    else:
        fused_target = tiled_target = target_block_bytes
    tiled_vmem_limit = (72 << 20) if big_vmem else (40 << 20)

    itemsize = jnp.dtype(x.dtype).itemsize
    bytes_per_image = C * HW * itemsize
    if bytes_per_image <= fused_block_limit_bytes:
        return _ca_fused(x, w1s, b1, w2, b2, fused_target, fused_vmem_limit)
    return _ca_tiled(x, w1s, b1, w2, b2, tiled_target, tiled_vmem_limit)


def ca_layer_ref(x, w1, b1, w2, b2):
    """Plain-JAX reference matching the PyTorch forward."""
    pooled = jnp.mean(x, axis=(2, 3), keepdims=True)                    # (N,C,1,1)
    h = jnp.einsum("rc,nchw->nrhw", w1, pooled) + b1[None, :, :, None]  # (N,Cr,1,1)
    h = jnp.maximum(h, 0.0)
    s = jnp.einsum("cr,nrhw->nchw", w2, h) + b2[None, :, :, None]       # (N,C,1,1)
    s = jax.nn.sigmoid(s)
    return x * s


if __name__ == "__main__":
    # reduction=16 -> channels must be a multiple of 16.
    # HW = 144 (not a multiple of 128) exercises the ragged-tail handling;
    # N = 3 exercises the non-divisor batch blocking (partial last batch block).
    N, C, H, W = 3, 64, 12, 12
    reduction = 16
    Cr = C // reduction

    key = jax.random.PRNGKey(0)
    kx, kw1, kb1, kw2, kb2 = jax.random.split(key, 5)

    x = jax.random.normal(kx, (N, C, H, W), dtype=jnp.float32)
    # PyTorch conv weights are (out, in, 1, 1); we store the squeezed matrices.
    w1 = jax.random.normal(kw1, (Cr, C), dtype=jnp.float32) * 0.1
    b1 = jax.random.normal(kb1, (Cr, 1), dtype=jnp.float32) * 0.1
    w2 = jax.random.normal(kw2, (C, Cr), dtype=jnp.float32) * 0.1
    b2 = jax.random.normal(kb2, (C, 1), dtype=jnp.float32) * 0.1

    ref = ca_layer_ref(x, w1, b1, w2, b2)

    # Fused single-pass path (default for small feature maps).
    out = jax.block_until_ready(ca_layer(x, w1, b1, w2, b2))
    assert out.shape == (N, C, H, W)
    assert jnp.allclose(out, ref, atol=1e-5, rtol=1e-5), "fused path mismatch vs reference"

    # Force the two-pass spatially tiled path (used for large H*W): 128-lane
    # tiles, ragged last tile (144 = 128 + 16) exercises the in-kernel mask and
    # the discarded out-of-bounds stores.
    out_tiled = jax.block_until_ready(
        ca_layer(x, w1, b1, w2, b2,
                 fused_block_limit_bytes=1,
                 target_block_bytes=C * _LANE * 4))
    assert jnp.allclose(out_tiled, ref, atol=1e-5, rtol=1e-5), "tiled path mismatch vs reference"

    print("KERNEL_OK")
</pallas_src>

<mosaic_0001>
module attributes {stable_mosaic.version = 11 : i64} {
  func.func @_ca_fused_kernel(%arg0: i32, %arg1: memref<2x64x144xf32, #tpu.memory_space<vmem>>, %arg2: memref<4x64xf32, #tpu.memory_space<vmem>>, %arg3: memref<1x4xf32, #tpu.memory_space<vmem>>, %arg4: memref<64x4xf32, #tpu.memory_space<vmem>>, %arg5: memref<64x1xf32, #tpu.memory_space<vmem>>, %arg6: memref<2x64x144xf32, #tpu.memory_space<vmem>>) attributes {dimension_semantics = [#tpu.dimension_semantics<parallel>], iteration_bounds = array<i64: 2>, scalar_prefetch = 0 : i64, scratch_operands = 0 : i64, tpu.core_type = #tpu.core_type<tc>, window_params = [{transform_indices = @transform_0, window_bounds = array<i64: 2, 64, 144>}, {pipeline_mode = #tpu.pipeline_mode<synchronous>, transform_indices = @transform_1, window_bounds = array<i64: 4, 64>}, {pipeline_mode = #tpu.pipeline_mode<synchronous>, transform_indices = @transform_2, window_bounds = array<i64: 1, 4>}, {pipeline_mode = #tpu.pipeline_mode<synchronous>, transform_indices = @transform_3, window_bounds = array<i64: 64, 4>}, {pipeline_mode = #tpu.pipeline_mode<synchronous>, transform_indices = @transform_4, window_bounds = array<i64: 64, 1>}, {transform_indices = @transform_5, window_bounds = array<i64: 2, 64, 144>}]} {
    %c0 = arith.constant 0 : index
    %c0_0 = arith.constant 0 : index
    %c0_1 = arith.constant 0 : index
    %0 = vector.load %arg1[%c0, %c0_0, %c0_1] : memref<2x64x144xf32, #tpu.memory_space<vmem>>, vector<2x64x144xf32>
    %cst = arith.constant dense<0.000000e+00> : vector<2x64xf32>
    %1 = vector.multi_reduction <add>, %0, %cst [2] : vector<2x64x144xf32> to vector<2x64xf32>
    %c0_2 = arith.constant 0 : index
    %c0_3 = arith.constant 0 : index
    %2 = vector.load %arg2[%c0_2, %c0_3] : memref<4x64xf32, #tpu.memory_space<vmem>>, vector<4x64xf32>
    %3 = vector.shape_cast %2 : vector<4x64xf32> to vector<1x4x64xf32>
    %4 = vector.shape_cast %1 : vector<2x64xf32> to vector<2x1x64xf32>
    %5 = vector.broadcast %3 : vector<1x4x64xf32> to vector<2x4x64xf32>
    %6 = vector.broadcast %4 : vector<2x1x64xf32> to vector<2x4x64xf32>
    %7 = arith.mulf %5, %6 : vector<2x4x64xf32>
    %cst_4 = arith.constant dense<0.000000e+00> : vector<2x4xf32>
    %8 = vector.multi_reduction <add>, %7, %cst_4 [2] : vector<2x4x64xf32> to vector<2x4xf32>
    %c0_5 = arith.constant 0 : index
    %c0_6 = arith.constant 0 : index
    %9 = vector.load %arg3[%c0_5, %c0_6] : memref<1x4xf32, #tpu.memory_space<vmem>>, vector<1x4xf32>
    %10 = vector.broadcast %9 : vector<1x4xf32> to vector<2x4xf32>
    %11 = arith.addf %8, %10 : vector<2x4xf32>
    %cst_7 = arith.constant 0.000000e+00 : f32
    %12 = vector.broadcast %cst_7 : f32 to vector<2x4xf32>
    %13 = arith.maximumf %11, %12 : vector<2x4xf32>
    %c0_8 = arith.constant 0 : index
    %c0_9 = arith.constant 0 : index
    %14 = vector.load %arg4[%c0_8, %c0_9] : memref<64x4xf32, #tpu.memory_space<vmem>>, vector<64x4xf32>
    %15 = vector.shape_cast %14 : vector<64x4xf32> to vector<1x64x4xf32>
    %16 = vector.shape_cast %13 : vector<2x4xf32> to vector<2x1x4xf32>
    %17 = vector.broadcast %15 : vector<1x64x4xf32> to vector<2x64x4xf32>
    %18 = vector.broadcast %16 : vector<2x1x4xf32> to vector<2x64x4xf32>
    %19 = arith.mulf %17, %18 : vector<2x64x4xf32>
    %cst_10 = arith.constant dense<0.000000e+00> : vector<2x64xf32>
    %20 = vector.multi_reduction <add>, %19, %cst_10 [2] : vector<2x64x4xf32> to vector<2x64xf32>
    %21 = vector.shape_cast %20 : vector<2x64xf32> to vector<2x64x1xf32>
    %c0_11 = arith.constant 0 : index
    %c0_12 = arith.constant 0 : index
    %22 = vector.load %arg5[%c0_11, %c0_12] : memref<64x1xf32, #tpu.memory_space<vmem>>, vector<64x1xf32>
    %23 = vector.shape_cast %22 : vector<64x1xf32> to vector<1x64x1xf32>
    %24 = vector.broadcast %23 : vector<1x64x1xf32> to vector<2x64x1xf32>
    %25 = arith.addf %21, %24 : vector<2x64x1xf32>
    %26 = arith.negf %25 : vector<2x64x1xf32>
    %27 = math.exp %26 : vector<2x64x1xf32>
    %cst_13 = arith.constant 1.000000e+00 : f32
    %28 = vector.broadcast %cst_13 : f32 to vector<2x64x1xf32>
    %29 = arith.addf %28, %27 : vector<2x64x1xf32>
    %30 = arith.divf %28, %29 : vector<2x64x1xf32>
    %31 = vector.broadcast %30 : vector<2x64x1xf32> to vector<2x64x144xf32>
    %32 = arith.mulf %0, %31 : vector<2x64x144xf32>
    %c0_14 = arith.constant 0 : index
    %c0_15 = arith.constant 0 : index
    %c0_16 = arith.constant 0 : index
    %33 = vector.load %arg6[%c0_14, %c0_15, %c0_16] : memref<2x64x144xf32, #tpu.memory_space<vmem>>, vector<2x64x144xf32>
    tpu.vector_store %arg6[%c0_14, %c0_15, %c0_16], %32 {strides = array<i32>} : memref<2x64x144xf32, #tpu.memory_space<vmem>>, vector<2x64x144xf32>,
    return
  }
  func.func @transform_0(%arg0: i32) -> (i32, i32, i32) {
    %c0_i32 = arith.constant 0 : i32
    %c0_i32_0 = arith.constant 0 : i32
    %c0_i32_1 = arith.constant 0 : i32
    return %arg0, %c0_i32, %c0_i32_0 : i32, i32, i32
  }
  func.func @transform_1(%arg0: i32) -> (i32, i32) {
    %c0_i32 = arith.constant 0 : i32
    %c0_i32_0 = arith.constant 0 : i32
    %c0_i32_1 = arith.constant 0 : i32
    return %c0_i32, %c0_i32_0 : i32, i32
  }
  func.func @transform_2(%arg0: i32) -> (i32, i32) {
    %c0_i32 = arith.constant 0 : i32
    %c0_i32_0 = arith.constant 0 : i32
    %c0_i32_1 = arith.constant 0 : i32
    return %c0_i32, %c0_i32_0 : i32, i32
  }
  func.func @transform_3(%arg0: i32) -> (i32, i32) {
    %c0_i32 = arith.constant 0 : i32
    %c0_i32_0 = arith.constant 0 : i32
    %c0_i32_1 = arith.constant 0 : i32
    return %c0_i32, %c0_i32_0 : i32, i32
  }
  func.func @transform_4(%arg0: i32) -> (i32, i32) {
    %c0_i32 = arith.constant 0 : i32
    %c0_i32_0 = arith.constant 0 : i32
    %c0_i32_1 = arith.constant 0 : i32
    return %c0_i32, %c0_i32_0 : i32, i32
  }
  func.func @transform_5(%arg0: i32) -> (i32, i32, i32) {
    %c0_i32 = arith.constant 0 : i32
    %c0_i32_0 = arith.constant 0 : i32
    %c0_i32_1 = arith.constant 0 : i32
    return %arg0, %c0_i32, %c0_i32_0 : i32, i32, i32
  }
}

</mosaic_0001>

<llo_original>
// kernel: tpu_custom_call.1
$region0: #{tpu_custom_call.1}
  #allocation0 [shape = 'u32[]', space=smem, size = 0x4, offset = 0x4, fixed_abs, tag = 'smem constant byte address 0x4 - core index']
  #allocation1 [shape = 'u32[72,128]{1,0:T(1,128)}', space=vmem, size = 0x9000, scoped, tag = 'internal scratch']
  %s0 = inlined_call_operand.hbm [shape: f32[3,64,144], index: 0, kind: input, shape index: {}]
  %s1 = inlined_call_operand.vmem [shape: f32[4,64], index: 1, kind: input, shape index: {}]
  %s2 = inlined_call_operand.vmem [shape: f32[1,4], index: 2, kind: input, shape index: {}]
  %s3 = inlined_call_operand.vmem [shape: f32[64,4], index: 3, kind: input, shape index: {}]
  %s4 = inlined_call_operand.vmem [shape: f32[64,1], index: 4, kind: input, shape index: {}]
  %s5 = inlined_call_operand.hbm [shape: f32[3,64,144], index: 5, kind: output, shape index: {}]
  %s6 = sld [smem:[#allocation0]]
  $region57: #{tpu_custom_call.1} parent=0
    _
  %s8 = ssub.s32 1, %s6
  %s9 = scalar_select 0, %s8, %s6
  $region1: #{tpu_custom_call.1} parent=0
    #allocation2 [shape = 'u8[262144]{0}', space=vmem, size = 0x40000, scoped, tag = 'input window, operand 0']
    #allocation3 [shape = 's32[2]{0}', space=sflag, size = 0x8, scoped, tag = 'scoped memory for tpu_custom_call.1']
    #allocation4 [shape = 's32[2]{0}', space=sflag, size = 0x8, scoped, tag = 'scoped memory for tpu_custom_call.1']
    #allocation5 [shape = 'u8[262144]{0}', space=vmem, size = 0x40000, scoped, tag = 'output window, operand 0']
    %10 = vsyncpa [#allocation3], 0
    %s11 = scalar_lea.sflag [#allocation3], 1
    %12 = vsyncpa %s11, 0
    %13 = vsyncpa [#allocation4], 0
    %s14 = scalar_lea.sflag [#allocation4], 1
    %15 = vsyncpa %s14, 0
    loop: start=0, step=1, limit=4
    $region2: #{tpu_custom_call.1} parent=1 // loop_pre_header
      _
    $region3: #{tpu_custom_call.1} parent=1 // loop_header
      %s17 = sphi 0, %s21
      %p18 = scmp.ge.s32.totalorder %s17, 4
      %s27 = sphi 0, %s29
      %s30 = sphi 0, %s27
      %s31 = sphi 0, %s30
      %s47 = sphi 0, %s31
      %s51 = sphi 0, %s51
      %s53 = sphi 0, %s51
      %s54 = sphi 0, %s53
      %s68 = sphi 0, %s54
      %s72 = sphi 0, %s72
      %s74 = sphi 0, %s72
      %s75 = sphi 0, %s74
      %s89 = sphi 0, %s75
      %s93 = sphi 0, %s93
      %s95 = sphi 0, %s93
      %s96 = sphi 0, %s95
      %s110 = sphi 0, %s96
      %s114 = sphi 0, %s114
      %s116 = sphi 0, %s114
      %s117 = sphi 0, %s116
      %s131 = sphi 0, %s117
      %s137 = sphi 0, %s139
      %s140 = sphi 0, %s137
      %s141 = sphi 0, %s140
      %s157 = sphi 0, %s141
    $region4: #{tpu_custom_call.1} parent=1 // loop_header_branch
      %20 = sbr.rel (%p18) target = $region8
    $region5: #{tpu_custom_call.1} parent=1 // loop_body
      %s22 = ssub.s32 %s17, 1
      %s23 = ssub.s32 %s17, 2
      %s24 = sadd.s32 %s17, 1
      %s25 = ssub.s32 %s17, %s24
      %p26 = scmp.eq.s32.totalorder %s25, 0
      %s28 = sadd.s32 %s27, 1
      %s29 = scalar_select %p26, %s27, %s28
      %p32 = pneg %p26
      %p33 = scmp.eq.s32.totalorder %s17, 1
      %p34 = por %p32, %p33
      %p35 = scmp.ne.s32.totalorder %s27, %s30
      %p36 = scmp.eq.s32.totalorder %s17, 0
      %p37 = por %p35, %p36
      %p38 = scmp.ne.s32.totalorder %s27, %s30
      %p39 = scmp.eq.s32.totalorder %s22, 1
      %p40 = por %p38, %p39
      %p41 = scmp.ne.s32.totalorder %s30, %s31
      %p42 = scmp.eq.s32.totalorder %s22, 0
      %p43 = por %p41, %p42
      %p44 = scmp.ne.s32.totalorder %s30, %s31
      %p45 = scmp.eq.s32.totalorder %s23, 1
      %p46 = por %p44, %p45
      %p48 = scmp.ne.s32.totalorder %s31, %s47
      %p49 = scmp.eq.s32.totalorder %s23, 0
      %p50 = por %p48, %p49
      %s52 = sadd.s32 %s51, 1
      %p55 = scmp.eq.s32.totalorder %s17, 1
      %p56 = scmp.ne.s32.totalorder %s51, %s53
      %p57 = scmp.eq.s32.totalorder %s17, 0
      %p58 = por %p56, %p57
      %p59 = scmp.ne.s32.totalorder %s51, %s53
      %p60 = scmp.eq.s32.totalorder %s22, 1
      %p61 = por %p59, %p60
      %p62 = scmp.ne.s32.totalorder %s53, %s54
      %p63 = scmp.eq.s32.totalorder %s22, 0
      %p64 = por %p62, %p63
      %p65 = scmp.ne.s32.totalorder %s53, %s54
      %p66 = scmp.eq.s32.totalorder %s23, 1
      %p67 = por %p65, %p66
      %p69 = scmp.ne.s32.totalorder %s54, %s68
      %p70 = scmp.eq.s32.totalorder %s23, 0
      %p71 = por %p69, %p70
      %s73 = sadd.s32 %s72, 1
      %p76 = scmp.eq.s32.totalorder %s17, 1
      %p77 = scmp.ne.s32.totalorder %s72, %s74
      %p78 = scmp.eq.s32.totalorder %s17, 0
      %p79 = por %p77, %p78
      %p80 = scmp.ne.s32.totalorder %s72, %s74
      %p81 = scmp.eq.s32.totalorder %s22, 1
      %p82 = por %p80, %p81
      %p83 = scmp.ne.s32.totalorder %s74, %s75
      %p84 = scmp.eq.s32.totalorder %s22, 0
      %p85 = por %p83, %p84
      %p86 = scmp.ne.s32.totalorder %s74, %s75
      %p87 = scmp.eq.s32.totalorder %s23, 1
      %p88 = por %p86, %p87
      %p90 = scmp.ne.s32.totalorder %s75, %s89
      %p91 = scmp.eq.s32.totalorder %s23, 0
      %p92 = por %p90, %p91
      %s94 = sadd.s32 %s93, 1
      %p97 = scmp.eq.s32.totalorder %s17, 1
      %p98 = scmp.ne.s32.totalorder %s93, %s95
      %p99 = scmp.eq.s32.totalorder %s17, 0
      %p100 = por %p98, %p99
      %p101 = scmp.ne.s32.totalorder %s93, %s95
      %p102 = scmp.eq.s32.totalorder %s22, 1
      %p103 = por %p101, %p102
      %p104 = scmp.ne.s32.totalorder %s95, %s96
      %p105 = scmp.eq.s32.totalorder %s22, 0
      %p106 = por %p104, %p105
      %p107 = scmp.ne.s32.totalorder %s95, %s96
      %p108 = scmp.eq.s32.totalorder %s23, 1
      %p109 = por %p107, %p108
      %p111 = scmp.ne.s32.totalorder %s96, %s110
      %p112 = scmp.eq.s32.totalorder %s23, 0
      %p113 = por %p111, %p112
      %s115 = sadd.s32 %s114, 1
      %p118 = scmp.eq.s32.totalorder %s17, 1
      %p119 = scmp.ne.s32.totalorder %s114, %s116
      %p120 = scmp.eq.s32.totalorder %s17, 0
      %p121 = por %p119, %p120
      %p122 = scmp.ne.s32.totalorder %s114, %s116
      %p123 = scmp.eq.s32.totalorder %s22, 1
      %p124 = por %p122, %p123
      %p125 = scmp.ne.s32.totalorder %s116, %s117
      %p126 = scmp.eq.s32.totalorder %s22, 0
      %p127 = por %p125, %p126
      %p128 = scmp.ne.s32.totalorder %s116, %s117
      %p129 = scmp.eq.s32.totalorder %s23, 1
      %p130 = por %p128, %p129
      %p132 = scmp.ne.s32.totalorder %s117, %s131
      %p133 = scmp.eq.s32.totalorder %s23, 0
      %p134 = por %p132, %p133
      %s135 = ssub.s32 %s17, %s24
      %p136 = scmp.eq.s32.totalorder %s135, 0
      %s138 = sadd.s32 %s137, 1
      %s139 = scalar_select %p136, %s137, %s138
      %p142 = pneg %p136
      %p143 = scmp.eq.s32.totalorder %s17, 1
      %p144 = por %p142, %p143
      %p145 = scmp.ne.s32.totalorder %s137, %s140
      %p146 = scmp.eq.s32.totalorder %s17, 0
      %p147 = por %p145, %p146
      %p148 = scmp.ne.s32.totalorder %s137, %s140
      %p149 = scmp.eq.s32.totalorder %s22, 1
      %p150 = por %p148, %p149
      %p151 = scmp.ne.s32.totalorder %s140, %s141
      %p152 = scmp.eq.s32.totalorder %s22, 0
      %p153 = por %p151, %p152
      %p154 = scmp.ne.s32.totalorder %s140, %s141
      %p155 = scmp.eq.s32.totalorder %s23, 1
      %p156 = por %p154, %p155
      %p158 = scmp.ne.s32.totalorder %s141, %s157
      %p159 = scmp.eq.s32.totalorder %s23, 0
      %p160 = por %p158, %p159
      %p161 = scmp.le.s32.totalorder 1, %s17
      %p162 = scmp.lt.s32.totalorder %s17, 3
      %p163 = pnand %p161, %p162
      %p164 = pneg %p163
      // Predicated region
      $region9: #{tpu_custom_call.1} parent=5 // pred_check
        _
      $region10: #{tpu_custom_call.1} parent=5 // pred_check_branch
        %166 = sbr.rel (%p163) target = $region12
      $region11: #{tpu_custom_call.1} parent=5 // pred_region
        %s167 = ssub.s32 %s17, 1
        // Predicated region
        $region13: #{tpu_custom_call.1} parent=11 // pred_check
          %p168 = pneg %p64
        $region14: #{tpu_custom_call.1} parent=11 // pred_check_branch
          %170 = sbr.rel (%p168) target = $region16
        $region15: #{tpu_custom_call.1} parent=11 // pred_region
          _
        $region16: #{tpu_custom_call.1} parent=11 // pred_fallthru
          _
        // Predicated region
        $region17: #{tpu_custom_call.1} parent=11 // pred_check
          %p171 = pneg %p85
        $region18: #{tpu_custom_call.1} parent=11 // pred_check_branch
          %173 = sbr.rel (%p171) target = $region20
        $region19: #{tpu_custom_call.1} parent=11 // pred_region
          _
        $region20: #{tpu_custom_call.1} parent=11 // pred_fallthru
          _
        // Predicated region
        $region21: #{tpu_custom_call.1} parent=11 // pred_check
          %p174 = pneg %p106
        $region22: #{tpu_custom_call.1} parent=11 // pred_check_branch
          %176 = sbr.rel (%p174) target = $region24
        $region23: #{tpu_custom_call.1} parent=11 // pred_region
          _
        $region24: #{tpu_custom_call.1} parent=11 // pred_fallthru
          _
        // Predicated region
        $region25: #{tpu_custom_call.1} parent=11 // pred_check
          %p177 = pneg %p127
        $region26: #{tpu_custom_call.1} parent=11 // pred_check_branch
          %179 = sbr.rel (%p177) target = $region28
        $region27: #{tpu_custom_call.1} parent=11 // pred_region
          _
        $region28: #{tpu_custom_call.1} parent=11 // pred_fallthru
          _
      $region12: #{tpu_custom_call.1} parent=5 // pred_fallthru
        _
      %p180 = scmp.lt.s32.totalorder %s17, 2
      // Predicated region
      $region29: #{tpu_custom_call.1} parent=5 // pred_check
        %p181 = pneg %p180
      $region30: #{tpu_custom_call.1} parent=5 // pred_check_branch
        %183 = sbr.rel (%p181) target = $region32
      $region31: #{tpu_custom_call.1} parent=5 // pred_region
        // Predicated region
        $region33: #{tpu_custom_call.1} parent=31 // pred_check
          %p184 = pneg %p37
        $region34: #{tpu_custom_call.1} parent=31 // pred_check_branch
          %186 = sbr.rel (%p184) target = $region36
        $region35: #{tpu_custom_call.1} parent=31 // pred_region
          %s187 = sand.u32 %s27, 1
          %s188 = scalar_lea.sflag [#allocation3], %s187
          %s189 = sand.u32 %s27, 1
          %s190 = smul.addr %s189, 256
          %s191 = scalar_lea.vmem [#allocation2], %s190
          %s192 = smul.u32 2, %s17
          %s193 = ssub.s32 3, %s192
          %p194 = scmp.lt.s32.totalorder %s193, 2
          %s195 = scalar_select %p194, %s193, 2
          %s196 = smul.u32 8, %s195
          %s197 = smul.u32 %s196, 8
          %s198 = smul.u32 %s197, 2
          %s199 = ssub.s32 256, %s198
          %s200 = sshll.u32 %s199, 4
          %201 = vsyncadd %s188, %s200
          %p202 = scmp.ne.s32.totalorder 0, %s198
          %s203 = smul.addr %s192, 16
          %s204 = smul.addr %s203, 8
          %s205 = scalar_lea.hbm %s0, %s204
          %s206 = smul.u32 %s195, 8
          %s207 = smul.u32 16, %s206
          %s208 = sshll.u32 %s205, 4
          %s209 = int_to_ptr.hbm [resolvable:$true] %s208
          %s210 = sshll.u32 %s191, 4
          %s211 = int_to_ptr.vmem [resolvable:$true] %s210
          %s212 = sshll.u32 %s207, 4
          %216 = dma.hbm_to_vmem [thread:$0]  (%p202), %s209, %s212, %s211, %s188, 256, 256, 16
        $region36: #{tpu_custom_call.1} parent=31 // pred_fallthru
          _
      $region32: #{tpu_custom_call.1} parent=5 // pred_fallthru
        _
      %p217 = scmp.le.s32.totalorder 1, %s17
      %p218 = scmp.lt.s32.totalorder %s17, 3
      %p219 = pnand %p217, %p218
      %p220 = pneg %p219
      // Predicated region
      $region37: #{tpu_custom_call.1} parent=5 // pred_check
        _
      $region38: #{tpu_custom_call.1} parent=5 // pred_check_branch
        %222 = sbr.rel (%p219) target = $region40
      $region39: #{tpu_custom_call.1} parent=5 // pred_region
        %s223 = ssub.s32 %s17, 1
        %s224 = sand.u32 %s30, 1
        %s225 = scalar_lea.sflag [#allocation3], %s224
        %s226 = sand.u32 %s30, 1
        %s227 = smul.addr %s226, 256
        %s228 = scalar_lea.vmem [#allocation2], %s227
        // Predicated region
        $region41: #{tpu_custom_call.1} parent=39 // pred_check
          %p229 = pneg %p43
        $region42: #{tpu_custom_call.1} parent=39 // pred_check_branch
          %231 = sbr.rel (%p229) target = $region44
        $region43: #{tpu_custom_call.1} parent=39 // pred_region
          %233 = dma.done %s225, 4096
        $region44: #{tpu_custom_call.1} parent=39 // pred_fallthru
          _
        %s234 = sand.u32 %s30, 1
        %s235 = scalar_lea.sflag [#allocation3], %s234
        %s236 = sand.u32 %s30, 1
        %s237 = smul.addr %s236, 256
        %s238 = scalar_lea.vmem [#allocation2], %s237
        %p239 = pneg %p43
        %p240 = pneg %p40
        %p241 = pneg %p64
        %p242 = pneg %p61
        %p243 = pneg %p85
        %p244 = pneg %p82
        %p245 = pneg %p106
        %p246 = pneg %p103
        %p247 = pneg %p127
        %p248 = pneg %p124
        %p249 = pneg %p153
        %p250 = pneg %p150
        %s251 = sand.u32 %s140, 1
        %s252 = scalar_lea.sflag [#allocation4], %s251
        %s253 = sand.u32 %s140, 1
        %s254 = smul.addr %s253, 256
        %s255 = scalar_lea.vmem [#allocation5], %s254
        %s256 = smul.u32 2, %s22
        %s257 = ssub.s32 3, %s256
        %p258 = scmp.lt.s32.totalorder %s257, 2
        %s259 = scalar_select %p258, %s257, 2
        %s260 = smul.u32 8, %s259
        %s261 = smul.u32 %s260, 8
        %s262 = smul.u32 %s261, 2
        %s263 = smul.u32 2, %s22
        %s264 = ssub.s32 3, %s263
        %p265 = scmp.lt.s32.totalorder %s264, 2
        %s266 = scalar_select %p265, %s264, 2
        %s267 = smul.u32 8, %s266
        %s268 = smul.u32 %s267, 8
        %s269 = smul.u32 %s268, 2
        %v270 = vld [vmem:[%s228] sm:$0xff]
        %v271 = vld [vmem:[%s228 + $0x8] sm:$0xff]
        %v272 = vld [vmem:[%s228 + $0x10] sm:$0xff]
        %v273 = vld [vmem:[%s228 + $0x18] sm:$0xff]
        %v274 = vld [vmem:[%s228 + $0x20] sm:$0xff]
        %v275 = vld [vmem:[%s228 + $0x28] sm:$0xff]
        %v276 = vld [vmem:[%s228 + $0x30] sm:$0xff]
        %v277 = vld [vmem:[%s228 + $0x38] sm:$0xff]
        %v278 = vld [vmem:[%s228 + $0x40] sm:$0xff]
        %v279 = vld [vmem:[%s228 + $0x48] sm:$0xff]
        %v280 = vld [vmem:[%s228 + $0x50] sm:$0xff]
        %v281 = vld [vmem:[%s228 + $0x58] sm:$0xff]
        %v282 = vld [vmem:[%s228 + $0x60] sm:$0xff]
        %v283 = vld [vmem:[%s228 + $0x68] sm:$0xff]
        %v284 = vld [vmem:[%s228 + $0x70] sm:$0xff]
        %v285 = vld [vmem:[%s228 + $0x78] sm:$0xff]
        %v286 = vld [vmem:[%s228 + $0x80] sm:$0xff]
        %v287 = vld [vmem:[%s228 + $0x88] sm:$0xff]
        %v288 = vld [vmem:[%s228 + $0x90] sm:$0xff]
        %v289 = vld [vmem:[%s228 + $0x98] sm:$0xff]
        %v290 = vld [vmem:[%s228 + $0xa0] sm:$0xff]
        %v291 = vld [vmem:[%s228 + $0xa8] sm:$0xff]
        %v292 = vld [vmem:[%s228 + $0xb0] sm:$0xff]
        %v293 = vld [vmem:[%s228 + $0xb8] sm:$0xff]
        %v294 = vld [vmem:[%s228 + $0xc0] sm:$0xff]
        %v295 = vld [vmem:[%s228 + $0xc8] sm:$0xff]
        %v296 = vld [vmem:[%s228 + $0xd0] sm:$0xff]
        %v297 = vld [vmem:[%s228 + $0xd8] sm:$0xff]
        %v298 = vld [vmem:[%s228 + $0xe0] sm:$0xff]
        %v299 = vld [vmem:[%s228 + $0xe8] sm:$0xff]
        %v300 = vld [vmem:[%s228 + $0xf0] sm:$0xff]
        %v301 = vld [vmem:[%s228 + $0xf8] sm:$0xff]
        %vm302 = vcmask 130048
        %v303 = vsel %vm302, %v271, 0.0
        %v304 = vadd.f32 %v270, %v303
        %305 = vadd.xlane.f32.xlu0 %v304
        %v306 = vpop.xlane.xlu0 %305
        %v307 = vsel %vm302, %v273, 0.0
        %v308 = vadd.f32 %v272, %v307
        %309 = vadd.xlane.f32.xlu0 %v308
        %v310 = vpop.xlane.xlu0 %309
        %v311 = vsel %vm302, %v275, 0.0
        %v312 = vadd.f32 %v274, %v311
        %313 = vadd.xlane.f32.xlu0 %v312
        %v314 = vpop.xlane.xlu0 %313
        %v315 = vsel %vm302, %v277, 0.0
        %v316 = vadd.f32 %v276, %v315
        %317 = vadd.xlane.f32.xlu0 %v316
        %v318 = vpop.xlane.xlu0 %317
        %v319 = vsel %vm302, %v279, 0.0
        %v320 = vadd.f32 %v278, %v319
        %321 = vadd.xlane.f32.xlu0 %v320
        %v322 = vpop.xlane.xlu0 %321
        %v323 = vsel %vm302, %v281, 0.0
        %v324 = vadd.f32 %v280, %v323
        %325 = vadd.xlane.f32.xlu0 %v324
        %v326 = vpop.xlane.xlu0 %325
        %v327 = vsel %vm302, %v283, 0.0
        %v328 = vadd.f32 %v282, %v327
        %329 = vadd.xlane.f32.xlu0 %v328
        %v330 = vpop.xlane.xlu0 %329
        %v331 = vsel %vm302, %v285, 0.0
        %v332 = vadd.f32 %v284, %v331
        %333 = vadd.xlane.f32.xlu0 %v332
        %v334 = vpop.xlane.xlu0 %333
        %v335 = vsel %vm302, %v287, 0.0
        %v336 = vadd.f32 %v286, %v335
        %337 = vadd.xlane.f32.xlu0 %v336
        %v338 = vpop.xlane.xlu0 %337
        %v339 = vsel %vm302, %v289, 0.0
        %v340 = vadd.f32 %v288, %v339
        %341 = vadd.xlane.f32.xlu0 %v340
        %v342 = vpop.xlane.xlu0 %341
        %v343 = vsel %vm302, %v291, 0.0
        %v344 = vadd.f32 %v290, %v343
        %345 = vadd.xlane.f32.xlu0 %v344
        %v346 = vpop.xlane.xlu0 %345
        %v347 = vsel %vm302, %v293, 0.0
        %v348 = vadd.f32 %v292, %v347
        %349 = vadd.xlane.f32.xlu0 %v348
        %v350 = vpop.xlane.xlu0 %349
        %v351 = vsel %vm302, %v295, 0.0
        %v352 = vadd.f32 %v294, %v351
        %353 = vadd.xlane.f32.xlu0 %v352
        %v354 = vpop.xlane.xlu0 %353
        %v355 = vsel %vm302, %v297, 0.0
        %v356 = vadd.f32 %v296, %v355
        %357 = vadd.xlane.f32.xlu0 %v356
        %v358 = vpop.xlane.xlu0 %357
        %v359 = vsel %vm302, %v299, 0.0
        %v360 = vadd.f32 %v298, %v359
        %361 = vadd.xlane.f32.xlu0 %v360
        %v362 = vpop.xlane.xlu0 %361
        %v363 = vsel %vm302, %v301, 0.0
        %v364 = vadd.f32 %v300, %v363
        %365 = vadd.xlane.f32.xlu0 %v364
        %v366 = vpop.xlane.xlu0 %365
        %v367 = vld [vmem:[%s1] sm:$0xf]
        %v384 = vlaneseq
        %v385 = vand.u32 %v384, 127
        %v386 = vperm.slane %v306, %v385
        %v387 = vadd.s32 %v385, 4294967288
        %v388 = vperm.slane %v310, %v387
        %vm389 = vcmask 130112
        %v390 = vsel %vm389, %v388, %v386
        %v391 = vadd.s32 %v385, 4294967280
        %v392 = vperm.slane %v314, %v391
        %vm393 = vcmask 195712
        %v394 = vsel %vm393, %v392, %v390
        %v395 = vadd.s32 %v385, 4294967272
        %v396 = vperm.slane %v318, %v395
        %vm397 = vcmask 261312
        %v398 = vsel %vm397, %v396, %v394
        %v399 = vadd.s32 %v385, 4294967264
        %v400 = vperm.slane %v322, %v399
        %vm401 = vcmask 326912
        %v402 = vsel %vm401, %v400, %v398
        %v403 = vadd.s32 %v385, 4294967256
        %v404 = vperm.slane %v326, %v403
        %vm405 = vcmask 392512
        %v406 = vsel %vm405, %v404, %v402
        %v407 = vadd.s32 %v385, 4294967248
        %v408 = vperm.slane %v330, %v407
        %vm409 = vcmask 458112
        %v410 = vsel %vm409, %v408, %v406
        %v411 = vadd.s32 %v385, 4294967240
        %v412 = vperm.slane %v334, %v411
        %vm413 = vcmask 523712
        %v414 = vsel %vm413, %v412, %v410
        %v415 = vperm.slane %v338, %v385
        %v416 = vperm.slane %v342, %v387
        %v417 = vsel %vm389, %v416, %v415
        %v418 = vperm.slane %v346, %v391
        %v419 = vsel %vm393, %v418, %v417
        %v420 = vperm.slane %v350, %v395
        %v421 = vsel %vm397, %v420, %v419
        %v422 = vperm.slane %v354, %v399
        %v423 = vsel %vm401, %v422, %v421
        %v424 = vperm.slane %v358, %v403
        %v425 = vsel %vm405, %v424, %v423
        %v426 = vperm.slane %v362, %v407
        %v427 = vsel %vm409, %v426, %v425
        %v428 = vperm.slane %v366, %v411
        %v429 = vsel %vm413, %v428, %v427
        %vm430 = vcmask 1042434
        %v431 = vsel %vm430, %v414, %v414
        %vm432 = vcmask 1043459
        %v433 = vsel %vm432, %v414, %v431
        %v434 = vsel %vm430, %v429, %v429
        %v435 = vsel %vm432, %v429, %v434
        %v438 = vmul.f32 %v367, %v433
        %v439 = vmul.f32 %v367, %v435
        %vm440 = vcmask 519168
        %v441 = vsel %vm440, %v438, 0.0
        %442 = vadd.xlane.f32.xlu0 %v441
        %v443 = vpop.xlane.xlu0 %442
        %v444 = vsel %vm440, %v439, 0.0
        %445 = vadd.xlane.f32.xlu0 %v444
        %v446 = vpop.xlane.xlu0 %445
        %v447 = vld [vmem:[%s2] sm:$0x1]
        %v449 = vperm.slane %v447, 0
        %v450 = vlaneseq
        %v451 = vshrl.u32 %v450, 7
        %453 = vset.pattern.permute.xlu0 %v451
        %454 = vperm.xlu0 %453, %v449
        %v455 = vpop.permute.xlu0 %454
        %v457 = vadd.f32 %v443, %v455
        %v458 = vadd.f32 %v446, %v455
        %v459 = vmax.f32 %v457, 0.0
        %v460 = vmax.f32 %v458, 0.0
        %v461 = vld [vmem:[%s3] sm:$0xff]
        %v462 = vld [vmem:[%s3 + $0x8] sm:$0xff]
        %v463 = vld [vmem:[%s3 + $0x10] sm:$0xff]
        %v464 = vld [vmem:[%s3 + $0x18] sm:$0xff]
        %v465 = vld [vmem:[%s3 + $0x20] sm:$0xff]
        %v466 = vld [vmem:[%s3 + $0x28] sm:$0xff]
        %v467 = vld [vmem:[%s3 + $0x30] sm:$0xff]
        %v468 = vld [vmem:[%s3 + $0x38] sm:$0xff]
        %471 = vset.pattern.permute.xlu0 0
        %472 = vperm.xlu0 %471, %v459
        %v473 = vpop.permute.xlu0 %472
        %474 = vset.pattern.permute.xlu0 0
        %475 = vperm.xlu0 %474, %v460
        %v476 = vpop.permute.xlu0 %475
        %v477 = vperm.slane %v473, %v385
        %v478 = vperm.slane %v476, %v385
        %v479 = vsel %vm430, %v477, %v477
        %v480 = vsel %vm432, %v477, %v479
        %vm481 = vcmask 1044484
        %v482 = vsel %vm481, %v477, %v480
        %vm483 = vcmask 1045509
        %v484 = vsel %vm483, %v477, %v482
        %vm485 = vcmask 1046534
        %v486 = vsel %vm485, %v477, %v484
        %vm487 = vcmask 1047559
        %v488 = vsel %vm487, %v477, %v486
        %v489 = vsel %vm430, %v478, %v478
        %v490 = vsel %vm432, %v478, %v489
        %v491 = vsel %vm481, %v478, %v490
        %v492 = vsel %vm483, %v478, %v491
        %v493 = vsel %vm485, %v478, %v492
        %v494 = vsel %vm487, %v478, %v493
        %v497 = vmul.f32 %v461, %v488
        %v498 = vmul.f32 %v462, %v488
        %v499 = vmul.f32 %v463, %v488
        %v500 = vmul.f32 %v464, %v488
        %v501 = vmul.f32 %v465, %v488
        %v502 = vmul.f32 %v466, %v488
        %v503 = vmul.f32 %v467, %v488
        %v504 = vmul.f32 %v468, %v488
        %v505 = vmul.f32 %v461, %v494
        %v506 = vmul.f32 %v462, %v494
        %v507 = vmul.f32 %v463, %v494
        %v508 = vmul.f32 %v464, %v494
        %v509 = vmul.f32 %v465, %v494
        %v510 = vmul.f32 %v466, %v494
        %v511 = vmul.f32 %v467, %v494
        %v512 = vmul.f32 %v468, %v494
        %vm513 = vcmask 31744
        %v514 = vsel %vm513, %v497, 0.0
        %515 = vadd.xlane.f32.xlu0 %v514
        %v516 = vpop.xlane.xlu0 %515
        %v517 = vsel %vm513, %v498, 0.0
        %518 = vadd.xlane.f32.xlu0 %v517
        %v519 = vpop.xlane.xlu0 %518
        %v520 = vsel %vm513, %v499, 0.0
        %521 = vadd.xlane.f32.xlu0 %v520
        %v522 = vpop.xlane.xlu0 %521
        %v523 = vsel %vm513, %v500, 0.0
        %524 = vadd.xlane.f32.xlu0 %v523
        %v525 = vpop.xlane.xlu0 %524
        %v526 = vsel %vm513, %v501, 0.0
        %527 = vadd.xlane.f32.xlu0 %v526
        %v528 = vpop.xlane.xlu0 %527
        %v529 = vsel %vm513, %v502, 0.0
        %530 = vadd.xlane.f32.xlu0 %v529
        %v531 = vpop.xlane.xlu0 %530
        %v532 = vsel %vm513, %v503, 0.0
        %533 = vadd.xlane.f32.xlu0 %v532
        %v534 = vpop.xlane.xlu0 %533
        %v535 = vsel %vm513, %v504, 0.0
        %536 = vadd.xlane.f32.xlu0 %v535
        %v537 = vpop.xlane.xlu0 %536
        %v538 = vsel %vm513, %v505, 0.0
        %539 = vadd.xlane.f32.xlu0 %v538
        %v540 = vpop.xlane.xlu0 %539
        %v541 = vsel %vm513, %v506, 0.0
        %542 = vadd.xlane.f32.xlu0 %v541
        %v543 = vpop.xlane.xlu0 %542
        %v544 = vsel %vm513, %v507, 0.0
        %545 = vadd.xlane.f32.xlu0 %v544
        %v546 = vpop.xlane.xlu0 %545
        %v547 = vsel %vm513, %v508, 0.0
        %548 = vadd.xlane.f32.xlu0 %v547
        %v549 = vpop.xlane.xlu0 %548
        %v550 = vsel %vm513, %v509, 0.0
        %551 = vadd.xlane.f32.xlu0 %v550
        %v552 = vpop.xlane.xlu0 %551
        %v553 = vsel %vm513, %v510, 0.0
        %554 = vadd.xlane.f32.xlu0 %v553
        %v555 = vpop.xlane.xlu0 %554
        %v556 = vsel %vm513, %v511, 0.0
        %557 = vadd.xlane.f32.xlu0 %v556
        %v558 = vpop.xlane.xlu0 %557
        %v559 = vsel %vm513, %v512, 0.0
        %560 = vadd.xlane.f32.xlu0 %v559
        %v561 = vpop.xlane.xlu0 %560
        %v562 = vld [vmem:[%s4] sm:$0xff]
        %v563 = vld [vmem:[%s4 + $0x8] sm:$0xff]
        %v564 = vld [vmem:[%s4 + $0x10] sm:$0xff]
        %v565 = vld [vmem:[%s4 + $0x18] sm:$0xff]
        %v566 = vld [vmem:[%s4 + $0x20] sm:$0xff]
        %v567 = vld [vmem:[%s4 + $0x28] sm:$0xff]
        %v568 = vld [vmem:[%s4 + $0x30] sm:$0xff]
        %v569 = vld [vmem:[%s4 + $0x38] sm:$0xff]
        %v570 = vadd.f32 %v516, %v562
        %v571 = vadd.f32 %v519, %v563
        %v572 = vadd.f32 %v522, %v564
        %v573 = vadd.f32 %v525, %v565
        %v574 = vadd.f32 %v528, %v566
        %v575 = vadd.f32 %v531, %v567
        %v576 = vadd.f32 %v534, %v568
        %v577 = vadd.f32 %v537, %v569
        %v578 = vadd.f32 %v540, %v562
        %v579 = vadd.f32 %v543, %v563
        %v580 = vadd.f32 %v546, %v564
        %v581 = vadd.f32 %v549, %v565
        %v582 = vadd.f32 %v552, %v566
        %v583 = vadd.f32 %v555, %v567
        %v584 = vadd.f32 %v558, %v568
        %v585 = vadd.f32 %v561, %v569
        %v586 = vxor.u32 %v570, 2147483648
        %v587 = vxor.u32 %v571, 2147483648
        %v588 = vxor.u32 %v572, 2147483648
        %v589 = vxor.u32 %v573, 2147483648
        %v590 = vxor.u32 %v574, 2147483648
        %v591 = vxor.u32 %v575, 2147483648
        %v592 = vxor.u32 %v576, 2147483648
        %v593 = vxor.u32 %v577, 2147483648
        %v594 = vxor.u32 %v578, 2147483648
        %v595 = vxor.u32 %v579, 2147483648
        %v596 = vxor.u32 %v580, 2147483648
        %v597 = vxor.u32 %v581, 2147483648
        %v598 = vxor.u32 %v582, 2147483648
        %v599 = vxor.u32 %v583, 2147483648
        %v600 = vxor.u32 %v584, 2147483648
        %v601 = vxor.u32 %v585, 2147483648
        %v602 = vmul.f32 %v586, 1.442695
        %v603 = vpow.pop %v602
        %v604 = vmul.f32 %v587, 1.442695
        %v605 = vpow.pop %v604
        %v606 = vmul.f32 %v588, 1.442695
        %v607 = vpow.pop %v606
        %v608 = vmul.f32 %v589, 1.442695
        %v609 = vpow.pop %v608
        %v610 = vmul.f32 %v590, 1.442695
        %v611 = vpow.pop %v610
        %v612 = vmul.f32 %v591, 1.442695
        %v613 = vpow.pop %v612
        %v614 = vmul.f32 %v592, 1.442695
        %v615 = vpow.pop %v614
        %v616 = vmul.f32 %v593, 1.442695
        %v617 = vpow.pop %v616
        %v618 = vmul.f32 %v594, 1.442695
        %v619 = vpow.pop %v618
        %v620 = vmul.f32 %v595, 1.442695
        %v621 = vpow.pop %v620
        %v622 = vmul.f32 %v596, 1.442695
        %v623 = vpow.pop %v622
        %v624 = vmul.f32 %v597, 1.442695
        %v625 = vpow.pop %v624
        %v626 = vmul.f32 %v598, 1.442695
        %v627 = vpow.pop %v626
        %v628 = vmul.f32 %v599, 1.442695
        %v629 = vpow.pop %v628
        %v630 = vmul.f32 %v600, 1.442695
        %v631 = vpow.pop %v630
        %v632 = vmul.f32 %v601, 1.442695
        %v633 = vpow.pop %v632
        %v634 = vadd.f32 %v603, 1.0
        %v635 = vadd.f32 %v605, 1.0
        %v636 = vadd.f32 %v607, 1.0
        %v637 = vadd.f32 %v609, 1.0
        %v638 = vadd.f32 %v611, 1.0
        %v639 = vadd.f32 %v613, 1.0
        %v640 = vadd.f32 %v615, 1.0
        %v641 = vadd.f32 %v617, 1.0
        %v642 = vadd.f32 %v619, 1.0
        %v643 = vadd.f32 %v621, 1.0
        %v644 = vadd.f32 %v623, 1.0
        %v645 = vadd.f32 %v625, 1.0
        %v646 = vadd.f32 %v627, 1.0
        %v647 = vadd.f32 %v629, 1.0
        %v648 = vadd.f32 %v631, 1.0
        %v649 = vadd.f32 %v633, 1.0
        %v650 = vrcp.pop %v634
        %v651 = vmul.f32 %v634, %v650
        %v652 = vsub.f32 1.0, %v651
        %v653 = vmul.f32 %v650, %v652
        %v654 = vadd.f32 %v650, %v653
        %vm655 = vweird.f32 %v634
        %vm656 = vweird.f32 %v650
        %vm657 = vmor %vm655, %vm656
        %v658 = vsel %vm657, %v650, %v654
        %v659 = vand.u32 2147483647, %v634
        %vm660 = vcmp.eq.f32.partialorder %v659, 8.507059e+37
        %v661 = vand.u32 %v634, 2147483648
        %v662 = vor.u32 1.1754944e-38, %v661
        %v663 = vsel %vm660, %v662, %v658
        %v664 = vmul.f32 1.0, %v663
        %v665 = vrcp.pop %v635
        %v666 = vmul.f32 %v635, %v665
        %v667 = vsub.f32 1.0, %v666
        %v668 = vmul.f32 %v665, %v667
        %v669 = vadd.f32 %v665, %v668
        %vm670 = vweird.f32 %v635
        %vm671 = vweird.f32 %v665
        %vm672 = vmor %vm670, %vm671
        %v673 = vsel %vm672, %v665, %v669
        %v674 = vand.u32 2147483647, %v635
        %vm675 = vcmp.eq.f32.partialorder %v674, 8.507059e+37
        %v676 = vand.u32 %v635, 2147483648
        %v677 = vor.u32 1.1754944e-38, %v676
        %v678 = vsel %vm675, %v677, %v673
        %v679 = vmul.f32 1.0, %v678
        %v680 = vrcp.pop %v636
        %v681 = vmul.f32 %v636, %v680
        %v682 = vsub.f32 1.0, %v681
        %v683 = vmul.f32 %v680, %v682
        %v684 = vadd.f32 %v680, %v683
        %vm685 = vweird.f32 %v636
        %vm686 = vweird.f32 %v680
        %vm687 = vmor %vm685, %vm686
        %v688 = vsel %vm687, %v680, %v684
        %v689 = vand.u32 2147483647, %v636
        %vm690 = vcmp.eq.f32.partialorder %v689, 8.507059e+37
        %v691 = vand.u32 %v636, 2147483648
        %v692 = vor.u32 1.1754944e-38, %v691
        %v693 = vsel %vm690, %v692, %v688
        %v694 = vmul.f32 1.0, %v693
        %v695 = vrcp.pop %v637
        %v696 = vmul.f32 %v637, %v695
        %v697 = vsub.f32 1.0, %v696
        %v698 = vmul.f32 %v695, %v697
        %v699 = vadd.f32 %v695, %v698
        %vm700 = vweird.f32 %v637
        %vm701 = vweird.f32 %v695
        %vm702 = vmor %vm700, %vm701
        %v703 = vsel %vm702, %v695, %v699
        %v704 = vand.u32 2147483647, %v637
        %vm705 = vcmp.eq.f32.partialorder %v704, 8.507059e+37
        %v706 = vand.u32 %v637, 2147483648
        %v707 = vor.u32 1.1754944e-38, %v706
        %v708 = vsel %vm705, %v707, %v703
        %v709 = vmul.f32 1.0, %v708
        %v710 = vrcp.pop %v638
        %v711 = vmul.f32 %v638, %v710
        %v712 = vsub.f32 1.0, %v711
        %v713 = vmul.f32 %v710, %v712
        %v714 = vadd.f32 %v710, %v713
        %vm715 = vweird.f32 %v638
        %vm716 = vweird.f32 %v710
        %vm717 = vmor %vm715, %vm716
        %v718 = vsel %vm717, %v710, %v714
        %v719 = vand.u32 2147483647, %v638
        %vm720 = vcmp.eq.f32.partialorder %v719, 8.507059e+37
        %v721 = vand.u32 %v638, 2147483648
        %v722 = vor.u32 1.1754944e-38, %v721
        %v723 = vsel %vm720, %v722, %v718
        %v724 = vmul.f32 1.0, %v723
        %v725 = vrcp.pop %v639
        %v726 = vmul.f32 %v639, %v725
        %v727 = vsub.f32 1.0, %v726
        %v728 = vmul.f32 %v725, %v727
        %v729 = vadd.f32 %v725, %v728
        %vm730 = vweird.f32 %v639
        %vm731 = vweird.f32 %v725
        %vm732 = vmor %vm730, %vm731
        %v733 = vsel %vm732, %v725, %v729
        %v734 = vand.u32 2147483647, %v639
        %vm735 = vcmp.eq.f32.partialorder %v734, 8.507059e+37
        %v736 = vand.u32 %v639, 2147483648
        %v737 = vor.u32 1.1754944e-38, %v736
        %v738 = vsel %vm735, %v737, %v733
        %v739 = vmul.f32 1.0, %v738
        %v740 = vrcp.pop %v640
        %v741 = vmul.f32 %v640, %v740
        %v742 = vsub.f32 1.0, %v741
        %v743 = vmul.f32 %v740, %v742
        %v744 = vadd.f32 %v740, %v743
        %vm745 = vweird.f32 %v640
        %vm746 = vweird.f32 %v740
        %vm747 = vmor %vm745, %vm746
        %v748 = vsel %vm747, %v740, %v744
        %v749 = vand.u32 2147483647, %v640
        %vm750 = vcmp.eq.f32.partialorder %v749, 8.507059e+37
        %v751 = vand.u32 %v640, 2147483648
        %v752 = vor.u32 1.1754944e-38, %v751
        %v753 = vsel %vm750, %v752, %v748
        %v754 = vmul.f32 1.0, %v753
        %v755 = vrcp.pop %v641
        %v756 = vmul.f32 %v641, %v755
        %v757 = vsub.f32 1.0, %v756
        %v758 = vmul.f32 %v755, %v757
        %v759 = vadd.f32 %v755, %v758
        %vm760 = vweird.f32 %v641
        %vm761 = vweird.f32 %v755
        %vm762 = vmor %vm760, %vm761
        %v763 = vsel %vm762, %v755, %v759
        %v764 = vand.u32 2147483647, %v641
        %vm765 = vcmp.eq.f32.partialorder %v764, 8.507059e+37
        %v766 = vand.u32 %v641, 2147483648
        %v767 = vor.u32 1.1754944e-38, %v766
        %v768 = vsel %vm765, %v767, %v763
        %v769 = vmul.f32 1.0, %v768
        %v770 = vrcp.pop %v642
        %v771 = vmul.f32 %v642, %v770
        %v772 = vsub.f32 1.0, %v771
        %v773 = vmul.f32 %v770, %v772
        %v774 = vadd.f32 %v770, %v773
        %vm775 = vweird.f32 %v642
        %vm776 = vweird.f32 %v770
        %vm777 = vmor %vm775, %vm776
        %v778 = vsel %vm777, %v770, %v774
        %v779 = vand.u32 2147483647, %v642
        %vm780 = vcmp.eq.f32.partialorder %v779, 8.507059e+37
        %v781 = vand.u32 %v642, 2147483648
        %v782 = vor.u32 1.1754944e-38, %v781
        %v783 = vsel %vm780, %v782, %v778
        %v784 = vmul.f32 1.0, %v783
        %v785 = vrcp.pop %v643
        %v786 = vmul.f32 %v643, %v785
        %v787 = vsub.f32 1.0, %v786
        %v788 = vmul.f32 %v785, %v787
        %v789 = vadd.f32 %v785, %v788
        %vm790 = vweird.f32 %v643
        %vm791 = vweird.f32 %v785
        %vm792 = vmor %vm790, %vm791
        %v793 = vsel %vm792, %v785, %v789
        %v794 = vand.u32 2147483647, %v643
        %vm795 = vcmp.eq.f32.partialorder %v794, 8.507059e+37
        %v796 = vand.u32 %v643, 2147483648
        %v797 = vor.u32 1.1754944e-38, %v796
        %v798 = vsel %vm795, %v797, %v793
        %v799 = vmul.f32 1.0, %v798
        %v800 = vrcp.pop %v644
        %v801 = vmul.f32 %v644, %v800
        %v802 = vsub.f32 1.0, %v801
        %v803 = vmul.f32 %v800, %v802
        %v804 = vadd.f32 %v800, %v803
        %vm805 = vweird.f32 %v644
        %vm806 = vweird.f32 %v800
        %vm807 = vmor %vm805, %vm806
        %v808 = vsel %vm807, %v800, %v804
        %v809 = vand.u32 2147483647, %v644
        %vm810 = vcmp.eq.f32.partialorder %v809, 8.507059e+37
        %v811 = vand.u32 %v644, 2147483648
        %v812 = vor.u32 1.1754944e-38, %v811
        %v813 = vsel %vm810, %v812, %v808
        %v814 = vmul.f32 1.0, %v813
        %v815 = vrcp.pop %v645
        %v816 = vmul.f32 %v645, %v815
        %v817 = vsub.f32 1.0, %v816
        %v818 = vmul.f32 %v815, %v817
        %v819 = vadd.f32 %v815, %v818
        %vm820 = vweird.f32 %v645
        %vm821 = vweird.f32 %v815
        %vm822 = vmor %vm820, %vm821
        %v823 = vsel %vm822, %v815, %v819
        %v824 = vand.u32 2147483647, %v645
        %vm825 = vcmp.eq.f32.partialorder %v824, 8.507059e+37
        %v826 = vand.u32 %v645, 2147483648
        %v827 = vor.u32 1.1754944e-38, %v826
        %v828 = vsel %vm825, %v827, %v823
        %v829 = vmul.f32 1.0, %v828
        %v830 = vrcp.pop %v646
        %v831 = vmul.f32 %v646, %v830
        %v832 = vsub.f32 1.0, %v831
        %v833 = vmul.f32 %v830, %v832
        %v834 = vadd.f32 %v830, %v833
        %vm835 = vweird.f32 %v646
        %vm836 = vweird.f32 %v830
        %vm837 = vmor %vm835, %vm836
        %v838 = vsel %vm837, %v830, %v834
        %v839 = vand.u32 2147483647, %v646
        %vm840 = vcmp.eq.f32.partialorder %v839, 8.507059e+37
        %v841 = vand.u32 %v646, 2147483648
        %v842 = vor.u32 1.1754944e-38, %v841
        %v843 = vsel %vm840, %v842, %v838
        %v844 = vmul.f32 1.0, %v843
        %v845 = vrcp.pop %v647
        %v846 = vmul.f32 %v647, %v845
        %v847 = vsub.f32 1.0, %v846
        %v848 = vmul.f32 %v845, %v847
        %v849 = vadd.f32 %v845, %v848
        %vm850 = vweird.f32 %v647
        %vm851 = vweird.f32 %v845
        %vm852 = vmor %vm850, %vm851
        %v853 = vsel %vm852, %v845, %v849
        %v854 = vand.u32 2147483647, %v647
        %vm855 = vcmp.eq.f32.partialorder %v854, 8.507059e+37
        %v856 = vand.u32 %v647, 2147483648
        %v857 = vor.u32 1.1754944e-38, %v856
        %v858 = vsel %vm855, %v857, %v853
        %v859 = vmul.f32 1.0, %v858
        %v860 = vrcp.pop %v648
        %v861 = vmul.f32 %v648, %v860
        %v862 = vsub.f32 1.0, %v861
        %v863 = vmul.f32 %v860, %v862
        %v864 = vadd.f32 %v860, %v863
        %vm865 = vweird.f32 %v648
        %vm866 = vweird.f32 %v860
        %vm867 = vmor %vm865, %vm866
        %v868 = vsel %vm867, %v860, %v864
        %v869 = vand.u32 2147483647, %v648
        %vm870 = vcmp.eq.f32.partialorder %v869, 8.507059e+37
        %v871 = vand.u32 %v648, 2147483648
        %v872 = vor.u32 1.1754944e-38, %v871
        %v873 = vsel %vm870, %v872, %v868
        %v874 = vmul.f32 1.0, %v873
        %v875 = vrcp.pop %v649
        %v876 = vmul.f32 %v649, %v875
        %v877 = vsub.f32 1.0, %v876
        %v878 = vmul.f32 %v875, %v877
        %v879 = vadd.f32 %v875, %v878
        %vm880 = vweird.f32 %v649
        %vm881 = vweird.f32 %v875
        %vm882 = vmor %vm880, %vm881
        %v883 = vsel %vm882, %v875, %v879
        %v884 = vand.u32 2147483647, %v649
        %vm885 = vcmp.eq.f32.partialorder %v884, 8.507059e+37
        %v886 = vand.u32 %v649, 2147483648
        %v887 = vor.u32 1.1754944e-38, %v886
        %v888 = vsel %vm885, %v887, %v883
        %v889 = vmul.f32 1.0, %v888
        %891 = vset.pattern.permute.xlu0 0
        %892 = vperm.xlu0 %891, %v664
        %v893 = vpop.permute.xlu0 %892
        %896 = vset.pattern.permute.xlu0 0
        %897 = vperm.xlu0 %896, %v679
        %v898 = vpop.permute.xlu0 %897
        %901 = vset.pattern.permute.xlu0 0
        %902 = vperm.xlu0 %901, %v694
        %v903 = vpop.permute.xlu0 %902
        %906 = vset.pattern.permute.xlu0 0
        %907 = vperm.xlu0 %906, %v709
        %v908 = vpop.permute.xlu0 %907
        %911 = vset.pattern.permute.xlu0 0
        %912 = vperm.xlu0 %911, %v724
        %v913 = vpop.permute.xlu0 %912
        %916 = vset.pattern.permute.xlu0 0
        %917 = vperm.xlu0 %916, %v739
        %v918 = vpop.permute.xlu0 %917
        %921 = vset.pattern.permute.xlu0 0
        %922 = vperm.xlu0 %921, %v754
        %v923 = vpop.permute.xlu0 %922
        %926 = vset.pattern.permute.xlu0 0
        %927 = vperm.xlu0 %926, %v769
        %v928 = vpop.permute.xlu0 %927
        %931 = vset.pattern.permute.xlu0 0
        %932 = vperm.xlu0 %931, %v784
        %v933 = vpop.permute.xlu0 %932
        %936 = vset.pattern.permute.xlu0 0
        %937 = vperm.xlu0 %936, %v799
        %v938 = vpop.permute.xlu0 %937
        %941 = vset.pattern.permute.xlu0 0
        %942 = vperm.xlu0 %941, %v814
        %v943 = vpop.permute.xlu0 %942
        %946 = vset.pattern.permute.xlu0 0
        %947 = vperm.xlu0 %946, %v829
        %v948 = vpop.permute.xlu0 %947
        %951 = vset.pattern.permute.xlu0 0
        %952 = vperm.xlu0 %951, %v844
        %v953 = vpop.permute.xlu0 %952
        %956 = vset.pattern.permute.xlu0 0
        %957 = vperm.xlu0 %956, %v859
        %v958 = vpop.permute.xlu0 %957
        %961 = vset.pattern.permute.xlu0 0
        %962 = vperm.xlu0 %961, %v874
        %v963 = vpop.permute.xlu0 %962
        %966 = vset.pattern.permute.xlu0 0
        %967 = vperm.xlu0 %966, %v889
        %v968 = vpop.permute.xlu0 %967
        %v970 = vmul.f32 %v270, %v893
        %v971 = vmul.f32 %v271, %v893
        %v972 = vmul.f32 %v272, %v898
        %v973 = vmul.f32 %v273, %v898
        %v974 = vmul.f32 %v274, %v903
        %v975 = vmul.f32 %v275, %v903
        %v976 = vmul.f32 %v276, %v908
        %v977 = vmul.f32 %v277, %v908
        %v978 = vmul.f32 %v278, %v913
        %v979 = vmul.f32 %v279, %v913
        %v980 = vmul.f32 %v280, %v918
        %v981 = vmul.f32 %v281, %v918
        %v982 = vmul.f32 %v282, %v923
        %v983 = vmul.f32 %v283, %v923
        %v984 = vmul.f32 %v284, %v928
        %v985 = vmul.f32 %v285, %v928
        %v986 = vmul.f32 %v286, %v933
        %v987 = vmul.f32 %v287, %v933
        %v988 = vmul.f32 %v288, %v938
        %v989 = vmul.f32 %v289, %v938
        %v990 = vmul.f32 %v290, %v943
        %v991 = vmul.f32 %v291, %v943
        %v992 = vmul.f32 %v292, %v948
        %v993 = vmul.f32 %v293, %v948
        %v994 = vmul.f32 %v294, %v953
        %v995 = vmul.f32 %v295, %v953
        %v996 = vmul.f32 %v296, %v958
        %v997 = vmul.f32 %v297, %v958
        %v998 = vmul.f32 %v298, %v963
        %v999 = vmul.f32 %v299, %v963
        %v1000 = vmul.f32 %v300, %v968
        %v1001 = vmul.f32 %v301, %v968
        %1002 = vst [vmem:[%s255] sm:$0xff] %v970
        %1003 = vst.msk [vmem:[%s255 + $0x8] sm:$0xff] %vm302, %v971
        %1004 = vst [vmem:[%s255 + $0x10] sm:$0xff] %v972
        %1005 = vst.msk [vmem:[%s255 + $0x18] sm:$0xff] %vm302, %v973
        %1006 = vst [vmem:[%s255 + $0x20] sm:$0xff] %v974
        %1007 = vst.msk [vmem:[%s255 + $0x28] sm:$0xff] %vm302, %v975
        %1008 = vst [vmem:[%s255 + $0x30] sm:$0xff] %v976
        %1009 = vst.msk [vmem:[%s255 + $0x38] sm:$0xff] %vm302, %v977
        %1010 = vst [vmem:[%s255 + $0x40] sm:$0xff] %v978
        %1011 = vst.msk [vmem:[%s255 + $0x48] sm:$0xff] %vm302, %v979
        %1012 = vst [vmem:[%s255 + $0x50] sm:$0xff] %v980
        %1013 = vst.msk [vmem:[%s255 + $0x58] sm:$0xff] %vm302, %v981
        %1014 = vst [vmem:[%s255 + $0x60] sm:$0xff] %v982
        %1015 = vst.msk [vmem:[%s255 + $0x68] sm:$0xff] %vm302, %v983
        %1016 = vst [vmem:[%s255 + $0x70] sm:$0xff] %v984
        %1017 = vst.msk [vmem:[%s255 + $0x78] sm:$0xff] %vm302, %v985
        %1018 = vst [vmem:[%s255 + $0x80] sm:$0xff] %v986
        %1019 = vst.msk [vmem:[%s255 + $0x88] sm:$0xff] %vm302, %v987
        %1020 = vst [vmem:[%s255 + $0x90] sm:$0xff] %v988
        %1021 = vst.msk [vmem:[%s255 + $0x98] sm:$0xff] %vm302, %v989
        %1022 = vst [vmem:[%s255 + $0xa0] sm:$0xff] %v990
        %1023 = vst.msk [vmem:[%s255 + $0xa8] sm:$0xff] %vm302, %v991
        %1024 = vst [vmem:[%s255 + $0xb0] sm:$0xff] %v992
        %1025 = vst.msk [vmem:[%s255 + $0xb8] sm:$0xff] %vm302, %v993
        %1026 = vst [vmem:[%s255 + $0xc0] sm:$0xff] %v994
        %1027 = vst.msk [vmem:[%s255 + $0xc8] sm:$0xff] %vm302, %v995
        %1028 = vst [vmem:[%s255 + $0xd0] sm:$0xff] %v996
        %1029 = vst.msk [vmem:[%s255 + $0xd8] sm:$0xff] %vm302, %v997
        %1030 = vst [vmem:[%s255 + $0xe0] sm:$0xff] %v998
        %1031 = vst.msk [vmem:[%s255 + $0xe8] sm:$0xff] %vm302, %v999
        %1032 = vst [vmem:[%s255 + $0xf0] sm:$0xff] %v1000
        %1033 = vst.msk [vmem:[%s255 + $0xf8] sm:$0xff] %vm302, %v1001
        %s1034 = sand.u32 %s140, 1
        %s1035 = scalar_lea.sflag [#allocation4], %s1034
        %s1036 = sand.u32 %s140, 1
        %s1037 = smul.addr %s1036, 256
        %s1038 = scalar_lea.vmem [#allocation5], %s1037
        // Predicated region
        $region45: #{tpu_custom_call.1} parent=39 // pred_check
          %p1039 = pneg %p150
        $region46: #{tpu_custom_call.1} parent=39 // pred_check_branch
          %1041 = sbr.rel (%p1039) target = $region48
        $region47: #{tpu_custom_call.1} parent=39 // pred_region
          %s1042 = smul.u32 2, %s22
          %s1043 = ssub.s32 3, %s1042
          %p1044 = scmp.lt.s32.totalorder %s1043, 2
          %s1045 = scalar_select %p1044, %s1043, 2
          %s1046 = smul.u32 8, %s1045
          %s1047 = smul.u32 %s1046, 8
          %s1048 = smul.u32 %s1047, 2
          %s1049 = ssub.s32 256, %s1048
          %s1050 = sshll.u32 %s1049, 4
          %1051 = vsyncadd %s1035, %s1050
          %p1052 = scmp.ne.s32.totalorder 0, %s1048
          %s1053 = smul.addr %s1042, 16
          %s1054 = smul.addr %s1053, 8
          %s1055 = scalar_lea.hbm %s5, %s1054
          %s1056 = smul.u32 %s1045, 8
          %s1057 = smul.u32 16, %s1056
          %s1058 = sshll.u32 %s1038, 4
          %s1059 = int_to_ptr.vmem [resolvable:$true] %s1058
          %s1060 = sshll.u32 %s1055, 4
          %s1061 = int_to_ptr.hbm [resolvable:$true] %s1060
          %s1062 = sshll.u32 %s1057, 4
          %1066 = dma.vmem_to_hbm [thread:$0]  (%p1052), %s1059, %s1062, %s1061, %s1035, 256, 256, 16
        $region48: #{tpu_custom_call.1} parent=39 // pred_fallthru
          _
      $region40: #{tpu_custom_call.1} parent=5 // pred_fallthru
        _
      %p1067 = scmp.le.s32.totalorder 2, %s17
      // Predicated region
      $region49: #{tpu_custom_call.1} parent=5 // pred_check
        %p1068 = pneg %p1067
      $region50: #{tpu_custom_call.1} parent=5 // pred_check_branch
        %1070 = sbr.rel (%p1068) target = $region52
      $region51: #{tpu_custom_call.1} parent=5 // pred_region
        %s1071 = ssub.s32 %s17, 2
        // Predicated region
        $region53: #{tpu_custom_call.1} parent=51 // pred_check
          %p1072 = pneg %p156
        $region54: #{tpu_custom_call.1} parent=51 // pred_check_branch
          %1074 = sbr.rel (%p1072) target = $region56
        $region55: #{tpu_custom_call.1} parent=51 // pred_region
          %s1075 = sand.u32 %s141, 1
          %s1076 = scalar_lea.sflag [#allocation4], %s1075
          %s1077 = sand.u32 %s141, 1
          %s1078 = smul.addr %s1077, 256
          %s1079 = scalar_lea.vmem [#allocation5], %s1078
          %1081 = dma.done %s1076, 4096
        $region56: #{tpu_custom_call.1} parent=51 // pred_fallthru
          _
      $region52: #{tpu_custom_call.1} parent=5 // pred_fallthru
        _
    $region6: #{tpu_custom_call.1} parent=1 // loop_footer
      %s21 = sadd.s32 1, %s17
    $region7: #{tpu_custom_call.1} parent=1 // loop_footer_branch
      %16 = sbr.rel target = $region3
    $region8: #{tpu_custom_call.1} parent=1 // loop_exit
      _
    %1082 = vsyncpa [#allocation3], 1
    %s1083 = scalar_lea.sflag [#allocation3], 1
    %1084 = vsyncpa %s1083, 1
    %1085 = vsyncpa [#allocation4], 1
    %s1086 = scalar_lea.sflag [#allocation4], 1
    %1087 = vsyncpa %s1086, 1

</llo_original>
